<compile_context>
chip_gen: v7x
topology: tpu7x:2x2x1
jax: 0.10.0
libtpu: 0.0.40
codegen_flags: <defaults>
</compile_context>

<pallas_src>
import math
import jax
import jax.numpy as jnp
from jax import lax
from jax.experimental import pallas as pl
from jax.experimental.pallas import tpu as pltpu


def _round_up(x, m):
    return -(-x // m) * m


# --------------------------- generic tiled matmul ---------------------------
# Used for the lm_head. bf16 operands straight into the MXU, f32 VMEM
# accumulator, pl.when init/finalize on the K (reduction) axis.

def _matmul_kernel(x_ref, w_ref, o_ref, acc_ref):
    @pl.when(pl.program_id(2) == 0)
    def _init():
        acc_ref[...] = jnp.zeros_like(acc_ref)

    acc_ref[...] += jnp.dot(x_ref[...], w_ref[...],
                            preferred_element_type=jnp.float32)

    @pl.when(pl.program_id(2) == pl.num_programs(2) - 1)
    def _finish():
        o_ref[...] = acc_ref[...].astype(o_ref.dtype)


def pallas_matmul(x, w, out_dtype=jnp.bfloat16, tm=512, tn=512, tk=1024):
    M, K = x.shape
    K2, N = w.shape
    assert K == K2
    # bf16 packs two rows per sublane -> row tiles are multiples of 16.
    tm = min(tm, _round_up(M, 16))
    tn = min(tn, _round_up(N, 128))
    tk = min(tk, _round_up(K, 128))
    Mp, Kp, Np = _round_up(M, tm), _round_up(K, tk), _round_up(N, tn)
    # Padding only triggers for ragged shapes; weights are aligned at init and
    # the demo activations are tile multiples, so these are no-ops here.
    xp = x if (Mp, Kp) == (M, K) else jnp.pad(x, ((0, Mp - M), (0, Kp - K)))
    wp = w if (Kp, Np) == (K, N) else jnp.pad(w, ((0, Kp - K), (0, Np - N)))

    out = pl.pallas_call(
        _matmul_kernel,
        out_shape=jax.ShapeDtypeStruct((Mp, Np), out_dtype),
        grid=(Mp // tm, Np // tn, Kp // tk),
        in_specs=[pl.BlockSpec((tm, tk), lambda i, j, k: (i, k)),
                  pl.BlockSpec((tk, tn), lambda i, j, k: (k, j))],
        out_specs=pl.BlockSpec((tm, tn), lambda i, j, k: (i, j)),
        scratch_shapes=[pltpu.VMEM((tm, tn), jnp.float32)],
        compiler_params=pltpu.CompilerParams(
            dimension_semantics=("parallel", "parallel", "arbitrary")),
    )(xp, wp)
    return out if (Mp, Np) == (M, N) else out[:M, :N]


# --------------------- fused QKV projection (head-blocked) -------------------
# (B*S, D) @ (3, H, D, Dh) -> (3, H, B*S, Dh): the head/qkv split is done by
# the out_specs index_map, so no jnp.split / transpose relayout afterwards.

def _qkv_kernel(x_ref, w_ref, o_ref, acc_ref):
    @pl.when(pl.program_id(3) == 0)
    def _init():
        acc_ref[...] = jnp.zeros_like(acc_ref)

    acc_ref[...] += jnp.dot(x_ref[...], w_ref[...],
                            preferred_element_type=jnp.float32)

    @pl.when(pl.program_id(3) == pl.num_programs(3) - 1)
    def _finish():
        o_ref[...] = acc_ref[...].astype(o_ref.dtype)


def qkv_projection(x2d, wqkv4, tm=512, tk=1024):
    BS, D = x2d.shape
    three, H, D2, Dh = wqkv4.shape
    assert three == 3 and D == D2
    assert BS % 16 == 0 and D % 128 == 0 and Dh % 128 == 0
    tm = min(tm, BS)
    tk = min(tk, D)
    assert BS % tm == 0 and D % tk == 0

    return pl.pallas_call(
        _qkv_kernel,
        out_shape=jax.ShapeDtypeStruct((3, H, BS, Dh), x2d.dtype),
        grid=(BS // tm, 3, H, D // tk),
        in_specs=[
            pl.BlockSpec((tm, tk), lambda i, t, h, k: (i, k)),
            pl.BlockSpec((None, None, tk, Dh), lambda i, t, h, k: (t, h, k, 0)),
        ],
        out_specs=pl.BlockSpec((None, None, tm, Dh),
                               lambda i, t, h, k: (t, h, i, 0)),
        scratch_shapes=[pltpu.VMEM((tm, Dh), jnp.float32)],
        compiler_params=pltpu.CompilerParams(
            dimension_semantics=("parallel", "parallel", "parallel",
                                 "arbitrary")),
    )(x2d, wqkv4)


# ------------------ attention with compressed KV memory ---------------------
# grid = (H, kv_tiles).  Memory block (always visible, no mask work) is
# processed at kv==0; new-key tiles are causal; online softmax accumulators in
# VMEM scratch.  Batch is folded into each grid step (fat MXU rows, few steps).

def _attn_mem_kernel(q_ref, kn_ref, vn_ref, kmem_ref, vmem_ref, o_ref,
                     m_sc, l_sc, acc_sc):
    B, S, Dh = q_ref.shape
    tkv = kn_ref.shape[1]
    BS = B * S
    kv = pl.program_id(1)
    scale = 1.0 / math.sqrt(Dh)

    # fold 1/sqrt(Dh) into q (B*S*Dh elems) instead of the score matrix
    q = q_ref[...] * scale                       # (B, S, Dh) bf16
    q2 = q.reshape(BS, Dh)

    @pl.when(kv == 0)
    def _init_and_memory():
        # memory keys are always visible -> no iota/compare/select work here;
        # batch-1 memory -> a single shared (BS,Dh)@(Dh,M) MXU pass (this is
        # the zero-copy expand_tensor_along_dim0).
        if kmem_ref.ndim == 2:
            s_mem = lax.dot_general(q2, kmem_ref[...],
                                    (((1,), (1,)), ((), ())),
                                    preferred_element_type=jnp.float32)
        else:
            s_mem = jnp.einsum('bsd,bmd->bsm', q, kmem_ref[...],
                               preferred_element_type=jnp.float32
                               ).reshape(BS, -1)
        m0 = jnp.max(s_mem, axis=-1, keepdims=True)
        p = jnp.exp(s_mem - m0)
        if kmem_ref.ndim == 2:
            pv = jnp.dot(p.astype(vmem_ref.dtype), vmem_ref[...],
                         preferred_element_type=jnp.float32)
        else:
            pv = jnp.einsum('bsm,bmd->bsd',
                            p.reshape(B, S, -1).astype(vmem_ref.dtype),
                            vmem_ref[...],
                            preferred_element_type=jnp.float32
                            ).reshape(BS, Dh)
        m_sc[...] = m0
        l_sc[...] = jnp.sum(p, axis=-1, keepdims=True)
        acc_sc[...] = pv

    # causal tile of the new keys (flash-style online-softmax update)
    kpos = lax.broadcasted_iota(jnp.int32, (S, tkv), 1) + kv * tkv
    qpos = lax.broadcasted_iota(jnp.int32, (S, tkv), 0)
    mask = kpos <= qpos                                        # (S, tkv)

    s_new = jnp.einsum('bsd,bkd->bsk', q, kn_ref[...],
                       preferred_element_type=jnp.float32)     # (B, S, tkv)
    s_new = jnp.where(mask, s_new, -1e30).reshape(BS, tkv)     # finite mask

    m_prev = m_sc[...]
    m_new = jnp.maximum(m_prev, jnp.max(s_new, axis=-1, keepdims=True))
    alpha = jnp.exp(m_prev - m_new)
    p_new = jnp.exp(s_new - m_new)
    l_sc[...] = alpha * l_sc[...] + jnp.sum(p_new, axis=-1, keepdims=True)
    pv_new = jnp.einsum('bsk,bkd->bsd',
                        p_new.reshape(B, S, tkv).astype(vn_ref.dtype),
                        vn_ref[...],
                        preferred_element_type=jnp.float32).reshape(BS, Dh)
    acc_sc[...] = alpha * acc_sc[...] + pv_new
    m_sc[...] = m_new

    @pl.when(kv == pl.num_programs(1) - 1)
    def _finish():
        o_ref[...] = (acc_sc[...]
                      * pl.reciprocal(l_sc[...], approx=True)
                      ).astype(o_ref.dtype)


def attention_with_memory(qkv5, k_past, v_past):
    """qkv5: (3, H, B, S, Dh) straight from the fused projection.
    k_past/v_past: (Bp, H, M, Dh) with Bp in {1, B}; Bp == 1 is broadcast
    zero-copy via the (constant) memory block index."""
    three, H, B, S, Dh = qkv5.shape
    Bp, Hp, M, Dhp = k_past.shape
    assert three == 3 and Hp == H and Dhp == Dh and Bp in (1, B)

    tkv = next((t for t in (256, 128) if S % t == 0), S)
    nkv = S // tkv

    if Bp == 1:
        mem_spec = pl.BlockSpec((None, None, M, Dh),
                                lambda h, kv: (0, h, 0, 0))
    else:
        mem_spec = pl.BlockSpec((Bp, None, M, Dh),
                                lambda h, kv: (0, h, 0, 0))

    return pl.pallas_call(
        _attn_mem_kernel,
        out_shape=jax.ShapeDtypeStruct((H, B * S, Dh), qkv5.dtype),
        grid=(H, nkv),
        in_specs=[
            pl.BlockSpec((None, None, B, S, Dh),
                         lambda h, kv: (0, h, 0, 0, 0)),        # q
            pl.BlockSpec((None, None, B, tkv, Dh),
                         lambda h, kv: (1, h, 0, kv, 0)),       # k_new tile
            pl.BlockSpec((None, None, B, tkv, Dh),
                         lambda h, kv: (2, h, 0, kv, 0)),       # v_new tile
            mem_spec,                                           # k_mem
            mem_spec,                                           # v_mem
        ],
        out_specs=pl.BlockSpec((None, B * S, Dh), lambda h, kv: (h, 0, 0)),
        scratch_shapes=[pltpu.VMEM((B * S, 1), jnp.float32),
                        pltpu.VMEM((B * S, 1), jnp.float32),
                        pltpu.VMEM((B * S, Dh), jnp.float32)],
        compiler_params=pltpu.CompilerParams(
            dimension_semantics=("parallel", "arbitrary")),
    )(qkv5, qkv5, qkv5, k_past, v_past)


# ------------- output projection: reduce over heads + residual --------------
# out = sum_h attn[h] @ wo3[h] + residual, consuming the (H, B*S, Dh) layout
# directly (no transpose back to (B*S, H*Dh)); heads are the K grid axis.

def _head_out_kernel(a_ref, w_ref, r_ref, o_ref, acc_ref):
    @pl.when(pl.program_id(2) == 0)
    def _init():
        acc_ref[...] = jnp.zeros_like(acc_ref)

    acc_ref[...] += jnp.dot(a_ref[...], w_ref[...],
                            preferred_element_type=jnp.float32)

    @pl.when(pl.program_id(2) == pl.num_programs(2) - 1)
    def _finish():
        o_ref[...] = (acc_ref[...]
                      + r_ref[...].astype(jnp.float32)).astype(o_ref.dtype)


def head_output_projection(attn, wo3, residual, tm=512, tn=512):
    H, BS, Dh = attn.shape
    H2, Dh2, D = wo3.shape
    assert H == H2 and Dh == Dh2 and residual.shape == (BS, D)
    tm = min(tm, BS)
    tn = min(tn, D)
    assert BS % tm == 0 and D % tn == 0

    return pl.pallas_call(
        _head_out_kernel,
        out_shape=jax.ShapeDtypeStruct((BS, D), residual.dtype),
        grid=(BS // tm, D // tn, H),
        in_specs=[
            pl.BlockSpec((None, tm, Dh), lambda i, j, h: (h, i, 0)),
            pl.BlockSpec((None, Dh, tn), lambda i, j, h: (h, 0, j)),
            pl.BlockSpec((tm, tn), lambda i, j, h: (i, j)),
        ],
        out_specs=pl.BlockSpec((tm, tn), lambda i, j, h: (i, j)),
        scratch_shapes=[pltpu.VMEM((tm, tn), jnp.float32)],
        compiler_params=pltpu.CompilerParams(
            dimension_semantics=("parallel", "parallel", "arbitrary")),
    )(attn, wo3, residual)


# ----------------------------- model wrapper --------------------------------

def init_params(key, *, vocab, d_model, n_layers, num_heads):
    Dh = d_model // num_heads
    ks = jax.random.split(key, 2 + 2 * n_layers)
    params = {
        "embed": (jax.random.normal(ks[0], (vocab, d_model)) * 0.02
                  ).astype(jnp.bfloat16),
        "lm_head": (jax.random.normal(ks[1], (d_model, vocab)) * 0.02
                    ).astype(jnp.bfloat16),
        # weights stored pre-reshaped once at init (no per-call pad/relayout):
        "wqkv": [],   # (3, H, D, Dh)
        "wo": [],     # (H, Dh, D)
    }
    for l in range(n_layers):
        wqkv = (jax.random.normal(ks[2 + 2 * l], (d_model, 3 * d_model)) * 0.02
                ).astype(jnp.bfloat16)
        wo = (jax.random.normal(ks[3 + 2 * l], (d_model, d_model)) * 0.02
              ).astype(jnp.bfloat16)
        params["wqkv"].append(
            wqkv.reshape(d_model, 3, num_heads, Dh).transpose(1, 2, 0, 3))
        params["wo"].append(wo.reshape(num_heads, Dh, d_model))
    return params


def init_kv_memory(key, *, n_layers, num_heads, memory_size, head_dim):
    """Compressed KV memory as produced by train(); stored with batch dim = 1."""
    kv = []
    ks = jax.random.split(key, 2 * n_layers)
    for l in range(n_layers):
        k = (jax.random.normal(ks[2 * l],
                               (1, num_heads, memory_size, head_dim)) * 0.5
             ).astype(jnp.bfloat16)
        v = (jax.random.normal(ks[2 * l + 1],
                               (1, num_heads, memory_size, head_dim)) * 0.5
             ).astype(jnp.bfloat16)
        kv.append([k, v])
    return kv


def compress_kv_learner_forward(params, kv, input_ids, *, num_heads):
    """Mirrors CompressKVLearner.forward: batch-expand the stored compressed
    KV memory (zero-copy via the attention index_map) and run the LM with that
    memory prepended to every layer's attention."""
    B, S = input_ids.shape
    D = params["embed"].shape[1]
    H = num_heads
    Dh = D // H

    # TODO(synk): embedding row gather is data-dependent; left to XLA.
    x2d = params["embed"][input_ids].reshape(B * S, D)          # (BS, D) bf16

    for l in range(len(kv)):
        qkv5 = qkv_projection(x2d, params["wqkv"][l])           # (3, H, BS, Dh)
        qkv5 = qkv5.reshape(3, H, B, S, Dh)                     # metadata-only
        attn = attention_with_memory(qkv5, kv[l][0], kv[l][1])  # (H, BS, Dh)
        x2d = head_output_projection(attn, params["wo"][l], x2d)  # (BS, D)

    vocab = params["lm_head"].shape[1]
    logits = pallas_matmul(x2d, params["lm_head"], out_dtype=jnp.float32)
    return logits.reshape(B, S, vocab)


# --------------------------------- main --------------------------------------

if __name__ == "__main__":
    # small synthetic config consistent with the module's mem_perceiver_config;
    # head_dim=128 and B*S % 16 == 0 keep everything lane-dense / pad-free.
    vocab = 512
    d_model = 256          # hidden_size/num_attention_heads * num_key_value_heads
    num_heads = 2          # num_key_value_heads
    head_dim = d_model // num_heads   # 128
    n_layers = 2           # num_hidden_layers
    memory_size = 16       # memory_size_limit (compressed KV memory length)
    batch, seq = 2, 16

    root = jax.random.PRNGKey(0)
    k_params, k_kv, k_ids = jax.random.split(root, 3)

    params = init_params(k_params, vocab=vocab, d_model=d_model,
                         n_layers=n_layers, num_heads=num_heads)
    # "trained" compressed KV memory (batch 1 -> broadcast to the input batch
    # inside the attention index_map, matching expand_tensor_along_dim0)
    kv = init_kv_memory(k_kv, n_layers=n_layers, num_heads=num_heads,
                        memory_size=memory_size, head_dim=head_dim)

    input_ids = jax.random.randint(k_ids, (batch, seq), 0, vocab,
                                   dtype=jnp.int32)

    logits = compress_kv_learner_forward(params, kv, input_ids,
                                         num_heads=num_heads)
    jax.block_until_ready(logits)
    assert logits.shape == (batch, seq, vocab)
    assert bool(jnp.isfinite(logits).all())
    print("KERNEL_OK")
</pallas_src>

<mosaic_0001>
module attributes {stable_mosaic.version = 11 : i64} {
  func.func @_qkv_kernel(%arg0: i32, %arg1: i32, %arg2: i32, %arg3: i32, %arg4: memref<32x256xbf16, #tpu.memory_space<vmem>>, %arg5: memref<1x1x256x128xbf16, #tpu.memory_space<vmem>>, %arg6: memref<1x1x32x128xbf16, #tpu.memory_space<vmem>>, %arg7: memref<32x128xf32, #tpu.memory_space<vmem>>) attributes {dimension_semantics = [#tpu.dimension_semantics<parallel>, #tpu.dimension_semantics<parallel>, #tpu.dimension_semantics<parallel>, #tpu.dimension_semantics<arbitrary>], iteration_bounds = array<i64: 1, 3, 2, 1>, scalar_prefetch = 0 : i64, scratch_operands = 1 : i64, tpu.core_type = #tpu.core_type<tc>, window_params = [{transform_indices = @transform_0, window_bounds = array<i64: 32, 256>}, {transform_indices = @transform_1, window_bounds = array<i64: 1, 1, 256, 128>}, {transform_indices = @transform_2, window_bounds = array<i64: 1, 1, 32, 128>}]} {
    %c0_i32 = arith.constant 0 : i32
    %0 = arith.cmpi eq, %arg3, %c0_i32 : i32
    %1 = arith.extui %0 : i1 to i32
    %c0_i32_0 = arith.constant 0 : i32
    %2 = arith.cmpi ne, %1, %c0_i32_0 : i32
    scf.if %2 {
      %cst_12 = arith.constant 0.000000e+00 : f32
      %13 = vector.broadcast %cst_12 : f32 to vector<32x128xf32>
      %c0_13 = arith.constant 0 : index
      %c0_14 = arith.constant 0 : index
      %14 = vector.load %arg7[%c0_13, %c0_14] : memref<32x128xf32, #tpu.memory_space<vmem>>, vector<32x128xf32>
      tpu.vector_store %arg7[%c0_13, %c0_14], %13 {strides = array<i32>} : memref<32x128xf32, #tpu.memory_space<vmem>>, vector<32x128xf32>,
    } else {
    }
    %c0 = arith.constant 0 : index
    %c0_1 = arith.constant 0 : index
    %3 = vector.load %arg7[%c0, %c0_1] : memref<32x128xf32, #tpu.memory_space<vmem>>, vector<32x128xf32>
    %c0_2 = arith.constant 0 : index
    %c0_3 = arith.constant 0 : index
    %4 = vector.load %arg4[%c0_2, %c0_3] : memref<32x256xbf16, #tpu.memory_space<vmem>>, vector<32x256xbf16>
    %c0_4 = arith.constant 0 : index
    %c0_5 = arith.constant 0 : index
    %c0_6 = arith.constant 0 : index
    %c0_7 = arith.constant 0 : index
    %5 = vector.load %arg5[%c0_4, %c0_5, %c0_6, %c0_7] : memref<1x1x256x128xbf16, #tpu.memory_space<vmem>>, vector<1x1x256x128xbf16>
    %6 = vector.shape_cast %5 : vector<1x1x256x128xbf16> to vector<256x128xbf16>
    %cst = arith.constant dense<0.000000e+00> : vector<32x128xf32>
    %7 = tpu.matmul %4, %6, %cst {dimension_numbers = #tpu.dot_dimension_numbers<[1], [0], [0], [1], [0, 0, 1, 1], [], []>} : vector<32x256xbf16>, vector<256x128xbf16>, vector<32x128xf32> -> vector<32x128xf32>
    %8 = arith.addf %3, %7 : vector<32x128xf32>
    %c0_8 = arith.constant 0 : index
    %c0_9 = arith.constant 0 : index
    %9 = vector.load %arg7[%c0_8, %c0_9] : memref<32x128xf32, #tpu.memory_space<vmem>>, vector<32x128xf32>
    tpu.vector_store %arg7[%c0_8, %c0_9], %8 {strides = array<i32>} : memref<32x128xf32, #tpu.memory_space<vmem>>, vector<32x128xf32>,
    %c0_i32_10 = arith.constant 0 : i32
    %10 = arith.cmpi eq, %arg3, %c0_i32_10 : i32
    %11 = arith.extui %10 : i1 to i32
    %c0_i32_11 = arith.constant 0 : i32
    %12 = arith.cmpi ne, %11, %c0_i32_11 : i32
    scf.if %12 {
      %c0_12 = arith.constant 0 : index
      %c0_13 = arith.constant 0 : index
      %13 = vector.load %arg7[%c0_12, %c0_13] : memref<32x128xf32, #tpu.memory_space<vmem>>, vector<32x128xf32>
      %14 = arith.truncf %13 : vector<32x128xf32> to vector<32x128xbf16>
      %c0_14 = arith.constant 0 : index
      %c0_15 = arith.constant 0 : index
      %c0_16 = arith.constant 0 : index
      %c0_17 = arith.constant 0 : index
      %15 = vector.load %arg6[%c0_14, %c0_15, %c0_16, %c0_17] : memref<1x1x32x128xbf16, #tpu.memory_space<vmem>>, vector<1x1x32x128xbf16>
      %16 = vector.shape_cast %15 : vector<1x1x32x128xbf16> to vector<32x128xbf16>
      %17 = vector.shape_cast %14 : vector<32x128xbf16> to vector<1x1x32x128xbf16>
      tpu.vector_store %arg6[%c0_14, %c0_15, %c0_16, %c0_17], %17 {strides = array<i32>} : memref<1x1x32x128xbf16, #tpu.memory_space<vmem>>, vector<1x1x32x128xbf16>,
    } else {
    }
    return
  }
  func.func @transform_0(%arg0: i32, %arg1: i32, %arg2: i32, %arg3: i32) -> (i32, i32) {
    %c0_i32 = arith.constant 0 : i32
    return %arg0, %arg3 : i32, i32
  }
  func.func @transform_1(%arg0: i32, %arg1: i32, %arg2: i32, %arg3: i32) -> (i32, i32, i32, i32) {
    %c0_i32 = arith.constant 0 : i32
    %c0_i32_0 = arith.constant 0 : i32
    return %arg1, %arg2, %arg3, %c0_i32 : i32, i32, i32, i32
  }
  func.func @transform_2(%arg0: i32, %arg1: i32, %arg2: i32, %arg3: i32) -> (i32, i32, i32, i32) {
    %c0_i32 = arith.constant 0 : i32
    %c0_i32_0 = arith.constant 0 : i32
    return %arg1, %arg2, %arg0, %c0_i32 : i32, i32, i32, i32
  }
}

</mosaic_0001>

<llo_original>
// kernel: tpu_custom_call.1
$region0: #{tpu_custom_call.1}
  #allocation0 [shape = 'u32[]', space=smem, size = 0x4, offset = 0x4, fixed_abs, tag = 'smem constant byte address 0x4 - core index']
  #allocation1 [shape = 'u32[144,128]{1,0:T(1,128)}', space=vmem, size = 0x12000, scoped, tag = 'internal scratch']
  #allocation2 [shape = 'f32[32,128]{1,0:T(8,128)}', space=vmem, size = 0x4000, scoped, tag = 'scratch operand']
  %s0 = inlined_call_operand.hbm [shape: bf16[32,256], index: 0, kind: input, shape index: {}]
  %s1 = inlined_call_operand.hbm [shape: bf16[3,2,256,128], index: 1, kind: input, shape index: {}]
  %s2 = inlined_call_operand.hbm [shape: bf16[3,2,32,128], index: 2, kind: output, shape index: {}]
  %s3 = sld [smem:[#allocation0]]
  $region57: #{tpu_custom_call.1} parent=0
    _
  %s5 = ssub.s32 1, %s3
  %s6 = scalar_select 0, %s5, %s3
  $region1: #{tpu_custom_call.1} parent=0
    #allocation3 [shape = 'u8[16384]{0}', space=vmem, size = 0x4000, scoped, tag = 'input window, operand 0, single buffered']
    #allocation4 [shape = 's32[2]{0}', space=sflag, size = 0x8, scoped, tag = 'scoped memory for tpu_custom_call.1']
    #allocation5 [shape = 's32[2]{0}', space=sflag, size = 0x8, scoped, tag = 'scoped memory for tpu_custom_call.1']
    #allocation6 [shape = 'u8[131072]{0}', space=vmem, size = 0x20000, scoped, tag = 'input window, operand 1']
    #allocation7 [shape = 's32[2]{0}', space=sflag, size = 0x8, scoped, tag = 'scoped memory for tpu_custom_call.1']
    #allocation8 [shape = 'u8[16384]{0}', space=vmem, size = 0x4000, scoped, tag = 'output window, operand 0']
    %7 = vsyncpa [#allocation4], 0
    %8 = vsyncpa [#allocation7], 0
    %s9 = scalar_lea.sflag [#allocation7], 1
    %10 = vsyncpa %s9, 0
    %11 = vsyncpa [#allocation5], 0
    %s12 = scalar_lea.sflag [#allocation5], 1
    %13 = vsyncpa %s12, 0
    loop: start=0, step=1, limit=8
    $region2: #{tpu_custom_call.1} parent=1 // loop_pre_header
      _
    $region3: #{tpu_custom_call.1} parent=1 // loop_header
      %s15 = sphi 0, %s19
      %p16 = scmp.ge.s32.totalorder %s15, 8
      %s22 = sphi 0, %s48
      %s23 = sphi 0, %s44
      %s24 = sphi 0, %s40
      %s25 = sphi 0, %s36
      %s26 = sphi 0, %s22
      %s27 = sphi 0, %s23
      %s28 = sphi 0, %s24
      %s29 = sphi 0, %s25
      %s30 = sphi 0, %s26
      %s31 = sphi 0, %s27
      %s32 = sphi 0, %s28
      %s33 = sphi 0, %s29
      %s53 = sphi 0, %s55
      %s56 = sphi 0, %s53
      %s57 = sphi 0, %s56
      %s73 = sphi 0, %s57
      %s83 = sphi 0, %s85
      %s86 = sphi 0, %s83
      %s87 = sphi 0, %s86
      %s103 = sphi 0, %s87
      %s113 = sphi 0, %s115
      %s116 = sphi 0, %s113
      %s117 = sphi 0, %s116
      %s133 = sphi 0, %s117
    $region4: #{tpu_custom_call.1} parent=1 // loop_header_branch
      %18 = sbr.rel (%p16) target = $region8
    $region5: #{tpu_custom_call.1} parent=1 // loop_body
      %s20 = ssub.s32 %s15, 1
      %s21 = ssub.s32 %s15, 2
      %s34 = sadd.s32 1, %s25
      %p35 = scmp.ge.s32.totalorder %s34, 1
      %s36 = scalar_select %p35, 0, %s34
      %s37 = sadd.s32 1, %s24
      %s38 = scalar_select %p35, %s37, %s24
      %p39 = scmp.ge.s32.totalorder %s38, 2
      %s40 = scalar_select %p39, 0, %s38
      %s41 = sadd.s32 1, %s23
      %s42 = scalar_select %p39, %s41, %s23
      %p43 = scmp.ge.s32.totalorder %s42, 3
      %s44 = scalar_select %p43, 0, %s42
      %s45 = sadd.s32 1, %s22
      %s46 = scalar_select %p43, %s45, %s22
      %p47 = scmp.ge.s32.totalorder %s46, 1
      %s48 = scalar_select %p47, 0, %s46
      %s49 = ssub.s32 %s22, %s48
      %s50 = ssub.s32 %s25, %s36
      %s51 = sor.u32 %s49, %s50
      %p52 = scmp.eq.s32.totalorder %s51, 0
      %s54 = sadd.s32 %s53, 1
      %s55 = scalar_select %p52, %s53, %s54
      %p58 = pneg %p52
      %p59 = scmp.eq.s32.totalorder %s15, 5
      %p60 = por %p58, %p59
      %p61 = scmp.ne.s32.totalorder %s53, %s56
      %p62 = scmp.eq.s32.totalorder %s15, 0
      %p63 = por %p61, %p62
      %p64 = scmp.ne.s32.totalorder %s53, %s56
      %p65 = scmp.eq.s32.totalorder %s20, 5
      %p66 = por %p64, %p65
      %p67 = scmp.ne.s32.totalorder %s56, %s57
      %p68 = scmp.eq.s32.totalorder %s20, 0
      %p69 = por %p67, %p68
      %p70 = scmp.ne.s32.totalorder %s56, %s57
      %p71 = scmp.eq.s32.totalorder %s21, 5
      %p72 = por %p70, %p71
      %p74 = scmp.ne.s32.totalorder %s57, %s73
      %p75 = scmp.eq.s32.totalorder %s21, 0
      %p76 = por %p74, %p75
      %s77 = ssub.s32 %s23, %s44
      %s78 = ssub.s32 %s24, %s40
      %s79 = sor.u32 %s77, %s78
      %s80 = ssub.s32 %s25, %s36
      %s81 = sor.u32 %s79, %s80
      %p82 = scmp.eq.s32.totalorder %s81, 0
      %s84 = sadd.s32 %s83, 1
      %s85 = scalar_select %p82, %s83, %s84
      %p88 = pneg %p82
      %p89 = scmp.eq.s32.totalorder %s15, 5
      %p90 = por %p88, %p89
      %p91 = scmp.ne.s32.totalorder %s83, %s86
      %p92 = scmp.eq.s32.totalorder %s15, 0
      %p93 = por %p91, %p92
      %p94 = scmp.ne.s32.totalorder %s83, %s86
      %p95 = scmp.eq.s32.totalorder %s20, 5
      %p96 = por %p94, %p95
      %p97 = scmp.ne.s32.totalorder %s86, %s87
      %p98 = scmp.eq.s32.totalorder %s20, 0
      %p99 = por %p97, %p98
      %p100 = scmp.ne.s32.totalorder %s86, %s87
      %p101 = scmp.eq.s32.totalorder %s21, 5
      %p102 = por %p100, %p101
      %p104 = scmp.ne.s32.totalorder %s87, %s103
      %p105 = scmp.eq.s32.totalorder %s21, 0
      %p106 = por %p104, %p105
      %s107 = ssub.s32 %s23, %s44
      %s108 = ssub.s32 %s24, %s40
      %s109 = sor.u32 %s107, %s108
      %s110 = ssub.s32 %s22, %s48
      %s111 = sor.u32 %s109, %s110
      %p112 = scmp.eq.s32.totalorder %s111, 0
      %s114 = sadd.s32 %s113, 1
      %s115 = scalar_select %p112, %s113, %s114
      %p118 = pneg %p112
      %p119 = scmp.eq.s32.totalorder %s15, 5
      %p120 = por %p118, %p119
      %p121 = scmp.ne.s32.totalorder %s113, %s116
      %p122 = scmp.eq.s32.totalorder %s15, 0
      %p123 = por %p121, %p122
      %p124 = scmp.ne.s32.totalorder %s113, %s116
      %p125 = scmp.eq.s32.totalorder %s20, 5
      %p126 = por %p124, %p125
      %p127 = scmp.ne.s32.totalorder %s116, %s117
      %p128 = scmp.eq.s32.totalorder %s20, 0
      %p129 = por %p127, %p128
      %p130 = scmp.ne.s32.totalorder %s116, %s117
      %p131 = scmp.eq.s32.totalorder %s21, 5
      %p132 = por %p130, %p131
      %p134 = scmp.ne.s32.totalorder %s117, %s133
      %p135 = scmp.eq.s32.totalorder %s21, 0
      %p136 = por %p134, %p135
      %p137 = scmp.le.s32.totalorder 1, %s15
      %p138 = scmp.lt.s32.totalorder %s15, 7
      %p139 = pnand %p137, %p138
      %p140 = pneg %p139
      // Predicated region
      $region9: #{tpu_custom_call.1} parent=5 // pred_check
        _
      $region10: #{tpu_custom_call.1} parent=5 // pred_check_branch
        %142 = sbr.rel (%p139) target = $region12
      $region11: #{tpu_custom_call.1} parent=5 // pred_region
        %s143 = ssub.s32 %s15, 1
        // Predicated region
        $region13: #{tpu_custom_call.1} parent=11 // pred_check
          %p144 = pneg %p69
        $region14: #{tpu_custom_call.1} parent=11 // pred_check_branch
          %146 = sbr.rel (%p144) target = $region16
        $region15: #{tpu_custom_call.1} parent=11 // pred_region
          %s147 = smul.u32 4, %s26
          %s148 = smul.u32 2, %s29
          %s150 = ssub.s32 512, 512
          %151 = vsyncadd [#allocation4], %s150
          %s152 = smul.addr %s147, 2
          %s153 = sadd.s32 %s148, %s152
          %s154 = smul.addr %s153, 64
          %s155 = scalar_lea.hbm %s0, %s154
          %s156 = sshll.u32 [#allocation3], 4
          %s157 = int_to_ptr.vmem [resolvable:$true] %s156
          %162 = dma.hbm_to_vmem [thread:$0]  %s155, 512, %s157, [#allocation4], 128, 128, 8
        $region16: #{tpu_custom_call.1} parent=11 // pred_fallthru
          _
      $region12: #{tpu_custom_call.1} parent=5 // pred_fallthru
        _
      %p163 = scmp.lt.s32.totalorder %s15, 6
      // Predicated region
      $region17: #{tpu_custom_call.1} parent=5 // pred_check
        %p164 = pneg %p163
      $region18: #{tpu_custom_call.1} parent=5 // pred_check_branch
        %166 = sbr.rel (%p164) target = $region20
      $region19: #{tpu_custom_call.1} parent=5 // pred_region
        // Predicated region
        $region21: #{tpu_custom_call.1} parent=19 // pred_check
          %p167 = pneg %p93
        $region22: #{tpu_custom_call.1} parent=19 // pred_check_branch
          %169 = sbr.rel (%p167) target = $region24
        $region23: #{tpu_custom_call.1} parent=19 // pred_region
          %s170 = sand.u32 %s83, 1
          %s171 = scalar_lea.sflag [#allocation7], %s170
          %s172 = sand.u32 %s83, 1
          %s173 = smul.addr %s172, 128
          %s174 = scalar_lea.vmem [#allocation6], %s173
          %s175 = smul.u32 32, %s25
          %s177 = ssub.s32 2048, 2048
          %178 = vsyncadd %s171, %s177
          %s179 = smul.addr %s24, 32
          %s180 = sadd.s32 %s175, %s179
          %s181 = smul.addr %s23, 64
          %s182 = sadd.s32 %s180, %s181
          %s183 = smul.addr %s182, 64
          %s184 = scalar_lea.hbm %s1, %s183
          %s185 = sshll.u32 %s174, 4
          %s186 = int_to_ptr.vmem [resolvable:$true] %s185
          %191 = dma.hbm_to_vmem [thread:$0]  %s184, 2048, %s186, %s171, 64, 64, 4
        $region24: #{tpu_custom_call.1} parent=19 // pred_fallthru
          _
      $region20: #{tpu_custom_call.1} parent=5 // pred_fallthru
        _
      %p192 = scmp.le.s32.totalorder 1, %s15
      %p193 = scmp.lt.s32.totalorder %s15, 7
      %p194 = pnand %p192, %p193
      %p195 = pneg %p194
      // Predicated region
      $region25: #{tpu_custom_call.1} parent=5 // pred_check
        _
      $region26: #{tpu_custom_call.1} parent=5 // pred_check_branch
        %197 = sbr.rel (%p194) target = $region28
      $region27: #{tpu_custom_call.1} parent=5 // pred_region
        %s198 = ssub.s32 %s15, 1
        // Predicated region
        $region29: #{tpu_custom_call.1} parent=27 // pred_check
          %p199 = pneg %p69
        $region30: #{tpu_custom_call.1} parent=27 // pred_check_branch
          %201 = sbr.rel (%p199) target = $region32
        $region31: #{tpu_custom_call.1} parent=27 // pred_region
          %202 = dma.done [#allocation4], 512
        $region32: #{tpu_custom_call.1} parent=27 // pred_fallthru
          _
        %s203 = sand.u32 %s86, 1
        %s204 = scalar_lea.sflag [#allocation7], %s203
        %s205 = sand.u32 %s86, 1
        %s206 = smul.addr %s205, 128
        %s207 = scalar_lea.vmem [#allocation6], %s206
        // Predicated region
        $region33: #{tpu_custom_call.1} parent=27 // pred_check
          %p208 = pneg %p99
        $region34: #{tpu_custom_call.1} parent=27 // pred_check_branch
          %210 = sbr.rel (%p208) target = $region36
        $region35: #{tpu_custom_call.1} parent=27 // pred_region
          %211 = dma.done %s204, 2048
        $region36: #{tpu_custom_call.1} parent=27 // pred_fallthru
          _
        %p212 = pneg %p69
        %p213 = pneg %p66
        %s214 = sand.u32 %s86, 1
        %s215 = scalar_lea.sflag [#allocation7], %s214
        %s216 = sand.u32 %s86, 1
        %s217 = smul.addr %s216, 128
        %s218 = scalar_lea.vmem [#allocation6], %s217
        %p219 = pneg %p99
        %p220 = pneg %p96
        %p221 = pneg %p129
        %p222 = pneg %p126
        %s223 = sand.u32 %s116, 1
        %s224 = scalar_lea.sflag [#allocation5], %s223
        %s225 = sand.u32 %s116, 1
        %s226 = smul.addr %s225, 16
        %s227 = scalar_lea.vmem [#allocation8], %s226
        %s228 = smul.u32 4, %s26
        %s229 = smul.u32 2, %s29
        %s230 = smul.u32 32, %s29
        %s231 = smul.u32 4, %s26
        %p233 = scmp.eq.s32.totalorder %s29, 0
        // Predicated region
        $region37: #{tpu_custom_call.1} parent=27 // pred_check
          %p234 = pneg %p233
        $region38: #{tpu_custom_call.1} parent=27 // pred_check_branch
          %236 = sbr.rel (%p234) target = $region40
        $region39: #{tpu_custom_call.1} parent=27 // pred_region
          %237 = vst [vmem:[#allocation2] sm:$0xff] 0.0
          %238 = vst [vmem:[#allocation2 + $0x8] sm:$0xff] 0.0
          %239 = vst [vmem:[#allocation2 + $0x10] sm:$0xff] 0.0
          %240 = vst [vmem:[#allocation2 + $0x18] sm:$0xff] 0.0
        $region40: #{tpu_custom_call.1} parent=27 // pred_fallthru
          _
        %v241 = vld [vmem:[#allocation2] sm:$0xff]
        %v242 = vld [vmem:[#allocation2 + $0x8] sm:$0xff]
        %v243 = vld [vmem:[#allocation2 + $0x10] sm:$0xff]
        %v244 = vld [vmem:[#allocation2 + $0x18] sm:$0xff]
        %v245 = vld [vmem:[#allocation3] sm:$0xff]
        %v246 = vld [vmem:[#allocation3 + $0x8] sm:$0xff]
        %v247 = vld [vmem:[#allocation3 + $0x10] sm:$0xff]
        %v248 = vld [vmem:[#allocation3 + $0x18] sm:$0xff]
        %v249 = vld [vmem:[%s207] sm:$0xf]
        %v250 = vld [vmem:[%s207 + $0x4] sm:$0xf]
        %v251 = vld [vmem:[%s207 + $0x8] sm:$0xf]
        %v252 = vld [vmem:[%s207 + $0xc] sm:$0xf]
        %v253 = vld [vmem:[%s207 + $0x10] sm:$0xf]
        %v254 = vld [vmem:[%s207 + $0x14] sm:$0xf]
        %v255 = vld [vmem:[%s207 + $0x18] sm:$0xf]
        %v256 = vld [vmem:[%s207 + $0x1c] sm:$0xf]
        %v257 = vld [vmem:[%s207 + $0x20] sm:$0xf]
        %v258 = vld [vmem:[%s207 + $0x24] sm:$0xf]
        %v259 = vld [vmem:[%s207 + $0x28] sm:$0xf]
        %v260 = vld [vmem:[%s207 + $0x2c] sm:$0xf]
        %v261 = vld [vmem:[%s207 + $0x30] sm:$0xf]
        %v262 = vld [vmem:[%s207 + $0x34] sm:$0xf]
        %v263 = vld [vmem:[%s207 + $0x38] sm:$0xf]
        %v264 = vld [vmem:[%s207 + $0x3c] sm:$0xf]
        %v265 = vld [vmem:[%s207 + $0x40] sm:$0xf]
        %v266 = vld [vmem:[%s207 + $0x44] sm:$0xf]
        %v267 = vld [vmem:[%s207 + $0x48] sm:$0xf]
        %v268 = vld [vmem:[%s207 + $0x4c] sm:$0xf]
        %v269 = vld [vmem:[%s207 + $0x50] sm:$0xf]
        %v270 = vld [vmem:[%s207 + $0x54] sm:$0xf]
        %v271 = vld [vmem:[%s207 + $0x58] sm:$0xf]
        %v272 = vld [vmem:[%s207 + $0x5c] sm:$0xf]
        %v273 = vld [vmem:[%s207 + $0x60] sm:$0xf]
        %v274 = vld [vmem:[%s207 + $0x64] sm:$0xf]
        %v275 = vld [vmem:[%s207 + $0x68] sm:$0xf]
        %v276 = vld [vmem:[%s207 + $0x6c] sm:$0xf]
        %v277 = vld [vmem:[%s207 + $0x70] sm:$0xf]
        %v278 = vld [vmem:[%s207 + $0x74] sm:$0xf]
        %v279 = vld [vmem:[%s207 + $0x78] sm:$0xf]
        %v280 = vld [vmem:[%s207 + $0x7c] sm:$0xf]
        %v285 = vunpack.c.l.b16 %v245
        %v286 = vunpack.c.h.b16 %v245
        %v287 = vunpack.c.l.b16 %v246
        %v288 = vunpack.c.h.b16 %v246
        %v289 = vunpack.c.l.b16 %v247
        %v290 = vunpack.c.h.b16 %v247
        %v291 = vunpack.c.l.b16 %v248
        %v292 = vunpack.c.h.b16 %v248
        %v293 = vpack.c.b16 %v287, %v285
        %v294 = vpack.c.b16 %v288, %v286
        %v295 = vpack.c.b16 %v291, %v289
        %v296 = vpack.c.b16 %v292, %v290
        %v333 = vunpack.c.l.b16 %v249
        %v334 = vunpack.c.l.b16 %v250
        %v335 = vunpack.c.l.b16 %v251
        %v336 = vunpack.c.l.b16 %v252
        %v337 = vunpack.c.l.b16 %v253
        %v338 = vunpack.c.l.b16 %v254
        %v339 = vunpack.c.l.b16 %v255
        %v340 = vunpack.c.l.b16 %v256
        %v341 = vunpack.c.l.b16 %v257
        %v342 = vunpack.c.l.b16 %v258
        %v343 = vunpack.c.l.b16 %v259
        %v344 = vunpack.c.l.b16 %v260
        %v345 = vunpack.c.l.b16 %v261
        %v346 = vunpack.c.l.b16 %v262
        %v347 = vunpack.c.l.b16 %v263
        %v348 = vunpack.c.l.b16 %v264
        %v349 = vunpack.c.l.b16 %v265
        %v350 = vunpack.c.l.b16 %v266
        %v351 = vunpack.c.l.b16 %v267
        %v352 = vunpack.c.l.b16 %v268
        %v353 = vunpack.c.l.b16 %v269
        %v354 = vunpack.c.l.b16 %v270
        %v355 = vunpack.c.l.b16 %v271
        %v356 = vunpack.c.l.b16 %v272
        %v357 = vunpack.c.l.b16 %v273
        %v358 = vunpack.c.l.b16 %v274
        %v359 = vunpack.c.l.b16 %v275
        %v360 = vunpack.c.l.b16 %v276
        %v361 = vunpack.c.l.b16 %v277
        %v362 = vunpack.c.l.b16 %v278
        %v363 = vunpack.c.l.b16 %v279
        %v364 = vunpack.c.l.b16 %v280
        %v365 = vpack.c.b16 %v334, %v333
        %v366 = vpack.c.b16 %v336, %v335
        %v367 = vpack.c.b16 %v338, %v337
        %v368 = vpack.c.b16 %v340, %v339
        %v369 = vpack.c.b16 %v342, %v341
        %v370 = vpack.c.b16 %v344, %v343
        %v371 = vpack.c.b16 %v346, %v345
        %v372 = vpack.c.b16 %v348, %v347
        %v373 = vpack.c.b16 %v350, %v349
        %v374 = vpack.c.b16 %v352, %v351
        %v375 = vpack.c.b16 %v354, %v353
        %v376 = vpack.c.b16 %v356, %v355
        %v377 = vpack.c.b16 %v358, %v357
        %v378 = vpack.c.b16 %v360, %v359
        %v379 = vpack.c.b16 %v362, %v361
        %v380 = vpack.c.b16 %v364, %v363
        %397 = vmatprep.subr.bf16.mxu0 0
        %398 = vmatpush1.bf16.msra.mxu0 %v365
        %399 = vmatprep.subr.bf16.mxu0 0
        %400 = vmatpush1.bf16.msra.mxu0 %v366
        %401 = vmatprep.subr.bf16.mxu0 0
        %402 = vmatpush1.bf16.msra.mxu0 %v367
        %403 = vmatprep.subr.bf16.mxu0 0
        %404 = vmatpush1.bf16.msra.mxu0 %v368
        %405 = vmatprep.subr.bf16.mxu0 0
        %406 = vmatpush1.bf16.msra.mxu0 %v369
        %407 = vmatprep.subr.bf16.mxu0 0
        %408 = vmatpush1.bf16.msra.mxu0 %v370
        %409 = vmatprep.subr.bf16.mxu0 0
        %410 = vmatpush1.bf16.msra.mxu0 %v371
        %411 = vmatprep.subr.bf16.mxu0 0
        %412 = vmatpush1.bf16.msra.mxu0 %v372
        %413 = vmatprep.subr.bf16.mxu0 0
        %414 = vmatpush1.bf16.msra.mxu0 %v373
        %415 = vmatprep.subr.bf16.mxu0 0
        %416 = vmatpush1.bf16.msra.mxu0 %v374
        %417 = vmatprep.subr.bf16.mxu0 0
        %418 = vmatpush1.bf16.msra.mxu0 %v375
        %419 = vmatprep.subr.bf16.mxu0 0
        %420 = vmatpush1.bf16.msra.mxu0 %v376
        %421 = vmatprep.subr.bf16.mxu0 0
        %422 = vmatpush1.bf16.msra.mxu0 %v377
        %423 = vmatprep.subr.bf16.mxu0 0
        %424 = vmatpush1.bf16.msra.mxu0 %v378
        %425 = vmatprep.subr.bf16.mxu0 0
        %426 = vmatpush1.bf16.msra.mxu0 %v379
        %427 = vmatprep.subr.bf16.mxu0 0
        %428 = vmatpush1.bf16.msra.mxu0 %v380
        %429 = vmatprep.mubr.bf16.mxu0 %v294
        %430 = vmatmul.mubr.bf16.gmra.mrb[0].mxu0 %v293
        %v431 = vpop.f32.mrb[0].mxu0
        %v432 = vadd.f32 0.0, %v431
        %v433 = vpop.f32.mrb[0].mxu0
        %v434 = vpop.f32.mrb[0].mxu0
        %v435 = vadd.f32 0.0, %v434
        %v436 = vpop.f32.mrb[0].mxu0
        %437 = vmatprep.mubr.bf16.mxu0 %v296
        %438 = vmatmul.mubr.bf16.gmra.mrb[0].mxu0 %v295
        %v439 = vpop.f32.mrb[0].mxu0
        %v440 = vadd.f32 0.0, %v439
        %v441 = vpop.f32.mrb[0].mxu0
        %v442 = vpop.f32.mrb[0].mxu0
        %v443 = vadd.f32 0.0, %v442
        %v444 = vpop.f32.mrb[0].mxu0
        %445 = vdwg.mxu0
        %v446 = vadd.f32 %v241, %v432
        %v447 = vadd.f32 %v242, %v435
        %v448 = vadd.f32 %v243, %v440
        %v449 = vadd.f32 %v244, %v443
        %450 = vst [vmem:[#allocation2] sm:$0xff] %v446
        %451 = vst [vmem:[#allocation2 + $0x8] sm:$0xff] %v447
        %452 = vst [vmem:[#allocation2 + $0x10] sm:$0xff] %v448
        %453 = vst [vmem:[#allocation2 + $0x18] sm:$0xff] %v449
        // Predicated region
        $region41: #{tpu_custom_call.1} parent=27 // pred_check
          %p454 = pneg %p233
        $region42: #{tpu_custom_call.1} parent=27 // pred_check_branch
          %456 = sbr.rel (%p454) target = $region44
        $region43: #{tpu_custom_call.1} parent=27 // pred_region
          %v457 = vld [vmem:[#allocation2] sm:$0xff]
          %v458 = vld [vmem:[#allocation2 + $0x8] sm:$0xff]
          %v459 = vld [vmem:[#allocation2 + $0x10] sm:$0xff]
          %v460 = vld [vmem:[#allocation2 + $0x18] sm:$0xff]
          %v461 = vpack.c.bf16 %v458, %v457
          %v462 = vpack.c.bf16 %v460, %v459
          %v465 = vunpack.c.l.b16 %v461
          %v466 = vunpack.c.h.b16 %v461
          %v467 = vunpack.c.l.b16 %v462
          %v468 = vunpack.c.h.b16 %v462
          %v469 = vpack.c.b16 %v465, %v465
          %v470 = vpack.c.b16 %v466, %v466
          %v471 = vpack.c.b16 %v467, %v467
          %v472 = vpack.c.b16 %v468, %v468
          %477 = vst [vmem:[%s227] sm:$0xf] %v469
          %478 = vst [vmem:[%s227 + $0x4] sm:$0xf] %v470
          %479 = vst [vmem:[%s227 + $0x8] sm:$0xf] %v471
          %480 = vst [vmem:[%s227 + $0xc] sm:$0xf] %v472
        $region44: #{tpu_custom_call.1} parent=27 // pred_fallthru
          _
        %s481 = sand.u32 %s116, 1
        %s482 = scalar_lea.sflag [#allocation5], %s481
        %s483 = sand.u32 %s116, 1
        %s484 = smul.addr %s483, 16
        %s485 = scalar_lea.vmem [#allocation8], %s484
        // Predicated region
        $region45: #{tpu_custom_call.1} parent=27 // pred_check
          %p486 = pneg %p126
        $region46: #{tpu_custom_call.1} parent=27 // pred_check_branch
          %488 = sbr.rel (%p486) target = $region48
        $region47: #{tpu_custom_call.1} parent=27 // pred_region
          %s489 = smul.u32 4, %s26
          %s491 = ssub.s32 256, 256
          %492 = vsyncadd %s482, %s491
          %s493 = smul.addr %s28, 4
          %s494 = sadd.s32 %s489, %s493
          %s495 = smul.addr %s27, 8
          %s496 = sadd.s32 %s494, %s495
          %s497 = smul.addr %s496, 64
          %s498 = scalar_lea.hbm %s2, %s497
          %s499 = sshll.u32 %s485, 4
          %s500 = int_to_ptr.vmem [resolvable:$true] %s499
          %505 = dma.vmem_to_hbm [thread:$0]  %s500, 256, %s498, %s482, 64, 64, 4
        $region48: #{tpu_custom_call.1} parent=27 // pred_fallthru
          _
      $region28: #{tpu_custom_call.1} parent=5 // pred_fallthru
        _
      %p506 = scmp.le.s32.totalorder 2, %s15
      // Predicated region
      $region49: #{tpu_custom_call.1} parent=5 // pred_check
        %p507 = pneg %p506
      $region50: #{tpu_custom_call.1} parent=5 // pred_check_branch
        %509 = sbr.rel (%p507) target = $region52
      $region51: #{tpu_custom_call.1} parent=5 // pred_region
        %s510 = ssub.s32 %s15, 2
        // Predicated region
        $region53: #{tpu_custom_call.1} parent=51 // pred_check
          %p511 = pneg %p132
        $region54: #{tpu_custom_call.1} parent=51 // pred_check_branch
          %513 = sbr.rel (%p511) target = $region56
        $region55: #{tpu_custom_call.1} parent=51 // pred_region
          %s514 = sand.u32 %s117, 1
          %s515 = scalar_lea.sflag [#allocation5], %s514
          %s516 = sand.u32 %s117, 1
          %s517 = smul.addr %s516, 16
          %s518 = scalar_lea.vmem [#allocation8], %s517
          %519 = dma.done %s515, 256
        $region56: #{tpu_custom_call.1} parent=51 // pred_fallthru
          _
      $region52: #{tpu_custom_call.1} parent=5 // pred_fallthru
        _
    $region6: #{tpu_custom_call.1} parent=1 // loop_footer
      %s19 = sadd.s32 1, %s15
    $region7: #{tpu_custom_call.1} parent=1 // loop_footer_branch
      %14 = sbr.rel target = $region3
    $region8: #{tpu_custom_call.1} parent=1 // loop_exit
      _
    %520 = vsyncpa [#allocation4], 1
    %s521 = scalar_lea.sflag [#allocation4], 1
    %522 = vsyncpa %s521, 1
    %523 = vsyncpa [#allocation7], 1
    %s524 = scalar_lea.sflag [#allocation7], 1
    %525 = vsyncpa %s524, 1
    %526 = vsyncpa [#allocation5], 1
    %s527 = scalar_lea.sflag [#allocation5], 1
    %528 = vsyncpa %s527, 1

</llo_original>
